<compile_context>
chip_gen: v6e
topology: v6e:2x2x1
jax: 0.10.0
libtpu: 0.0.40
codegen_flags: <defaults>
</compile_context>

<pallas_src>
import functools

import jax
import jax.numpy as jnp
from jax.experimental import pallas as pl
from jax.experimental.pallas import tpu as pltpu


def _mlp_fused_kernel(x_ref, *refs, n_layers, skip_set, c0, compute_dtype):
    """x_ref: (1, C0, tn).  refs = (w0, b0, ..., w_{L-1}, b_{L-1}, o_ref).

    Weights are (Cout, Cin) (PyTorch Conv1d weight with the k=1 dim squeezed),
    biases are (Cout, 1).  Activations are (C, tn) slabs with N on lanes.
    """
    o_ref = refs[-1]
    x0 = x_ref[0]              # (C0, tn) f32 — kept for the skip connection
    h = x0

    def mm(a, b):
        if compute_dtype is not None:
            a = a.astype(compute_dtype)
            b = b.astype(compute_dtype)
        return jnp.dot(a, b, preferred_element_type=jnp.float32)

    for l in range(n_layers):
        w = refs[2 * l][...]           # (Cout, Cin_total)
        bias = refs[2 * l + 1][...]    # (Cout, 1)
        if l in skip_set:
            # Conv input was cat([y, x0], channel): first Cl channels are y.
            cl = w.shape[1] - c0
            y = mm(w[:, :cl], h) + mm(w[:, cl:], x0)
        else:
            y = mm(w, h)
        y = y + bias                   # f32 epilogue (safe on v5e too)
        if l != n_layers - 1:
            # F.leaky_relu default negative_slope = 0.01
            y = jnp.where(y > 0, y, jnp.float32(0.01) * y)
        h = y

    o_ref[0] = h.astype(o_ref.dtype)


def _pick_lane_tile(n):
    """Largest lane-dense tile that divides N; fall back to the full extent."""
    for tn in (512, 256, 128):
        if n % tn == 0:
            return tn
    return n  # block == full dim is always a legal BlockSpec


def init_mlp_params(dims, key):
    """Deterministic params. Weight stored as (Cout, Cin) (== PyTorch Conv1d
    weight (Cout, Cin, 1) squeezed), bias as (Cout, 1)."""
    skip_layer = [int(len(dims) / 2)]
    params = []
    for l in range(len(dims) - 1):
        cin = dims[l] + dims[0] if l in skip_layer else dims[l]
        cout = dims[l + 1]
        key, kw, kb = jax.random.split(key, 3)
        bound = 1.0 / (cin ** 0.5)  # mimic PyTorch conv default uniform bound
        w = jax.random.uniform(kw, (cout, cin), jnp.float32, -bound, bound)
        b = jax.random.uniform(kb, (cout, 1), jnp.float32, -bound, bound)
        params.append((w, b))
    return params, skip_layer


def mlp_forward(latent_code, params, dims, skip_layer, last_op=None,
                return_all=False, compute_dtype=None):
    """latent_code: (B, C0, N) NCW, like the PyTorch module.

    compute_dtype: optionally jnp.bfloat16 to feed the MXU bf16 operands on
    v6e/v7x (accumulation + epilogue stay f32).  Default keeps full f32.
    """
    B, C0, N = latent_code.shape
    assert C0 == dims[0]
    n_layers = len(params)
    cout = dims[-1]
    tn = _pick_lane_tile(N)
    assert N % tn == 0

    kernel = functools.partial(
        _mlp_fused_kernel,
        n_layers=n_layers,
        skip_set=frozenset(skip_layer),
        c0=C0,
        compute_dtype=compute_dtype,
    )

    # Input block keeps NCW layout: N on lanes, channels on sublanes.
    in_specs = [pl.BlockSpec((1, C0, tn), lambda b, n: (b, 0, n))]
    flat_wb = []
    for (w, b) in params:
        in_specs.append(pl.BlockSpec(w.shape, lambda b_, n_: (0, 0)))  # whole weight, VMEM-resident
        in_specs.append(pl.BlockSpec(b.shape, lambda b_, n_: (0, 0)))  # whole bias
        flat_wb.extend([w, b])

    y = pl.pallas_call(
        kernel,
        out_shape=jax.ShapeDtypeStruct((B, cout, N), latent_code.dtype),
        grid_spec=pltpu.PrefetchScalarGridSpec(
            num_scalar_prefetch=0,
            grid=(B, N // tn),
            in_specs=in_specs,
            out_specs=pl.BlockSpec((1, cout, tn), lambda b, n: (b, 0, n)),
        ),
        compiler_params=pltpu.CompilerParams(
            dimension_semantics=("parallel", "parallel"),
        ),
    )(latent_code, *flat_wb)

    # Match the PyTorch module's last_op / return_all semantics
    # (return_all=True with no last_op returns an empty list, as in the original).
    y_list = []
    if last_op is not None:
        y = last_op(y)
        y_list.append(y)
    if return_all:
        return y_list
    return y


if __name__ == "__main__":
    # Small config consistent with the module: Conv1d stack over (B, C, N).
    dims = [16, 32, 32, 32, 8]      # skip layer at index 2 (concat +dims[0])
    B, N = 2, 256                    # N multiple of 128 -> lane-dense tiles
    key = jax.random.PRNGKey(0)
    kx, kp = jax.random.split(key)

    latent_code = jax.random.normal(kx, (B, dims[0], N), jnp.float32)
    params, skip_layer = init_mlp_params(dims, kp)

    out = mlp_forward(latent_code, params, dims, skip_layer, last_op=None)
    out = jax.block_until_ready(out)

    # Pure-JAX reference of the same semantics for a sanity check.
    def ref_forward(x):
        y = x
        x0 = x
        for l, (w, b) in enumerate(params):
            inp = jnp.concatenate([y, x0], axis=1) if l in skip_layer else y
            y = jnp.einsum('oi,bin->bon', w, inp,
                           precision=jax.lax.Precision.HIGHEST) + b[None, :, :]
            if l != len(params) - 1:
                y = jnp.where(y > 0, y, 0.01 * y)
        return y

    ref = jax.block_until_ready(ref_forward(latent_code))
    assert out.shape == (B, dims[-1], N)
    assert jnp.allclose(out, ref, atol=1e-4, rtol=1e-4)

    # Also exercise the optional last_op path (e.g. sigmoid head), like the module.
    out_sig = mlp_forward(latent_code, params, dims, skip_layer,
                          last_op=jax.nn.sigmoid)
    out_sig = jax.block_until_ready(out_sig)
    assert jnp.allclose(out_sig, jax.nn.sigmoid(ref), atol=1e-4, rtol=1e-4)

    print("KERNEL_OK")
</pallas_src>

<mosaic_0001>
module attributes {stable_mosaic.version = 11 : i64} {
  func.func @_mlp_fused_kernel(%arg0: i32, %arg1: i32, %arg2: memref<1x16x256xf32, #tpu.memory_space<vmem>>, %arg3: memref<32x16xf32, #tpu.memory_space<vmem>>, %arg4: memref<32x1xf32, #tpu.memory_space<vmem>>, %arg5: memref<32x32xf32, #tpu.memory_space<vmem>>, %arg6: memref<32x1xf32, #tpu.memory_space<vmem>>, %arg7: memref<32x48xf32, #tpu.memory_space<vmem>>, %arg8: memref<32x1xf32, #tpu.memory_space<vmem>>, %arg9: memref<8x32xf32, #tpu.memory_space<vmem>>, %arg10: memref<8x1xf32, #tpu.memory_space<vmem>>, %arg11: memref<1x8x256xf32, #tpu.memory_space<vmem>>) attributes {dimension_semantics = [#tpu.dimension_semantics<parallel>, #tpu.dimension_semantics<parallel>], iteration_bounds = array<i64: 2, 1>, scalar_prefetch = 0 : i64, scratch_operands = 0 : i64, tpu.core_type = #tpu.core_type<tc>, window_params = [{transform_indices = @transform_0, window_bounds = array<i64: 1, 16, 256>}, {pipeline_mode = #tpu.pipeline_mode<synchronous>, transform_indices = @transform_1, window_bounds = array<i64: 32, 16>}, {pipeline_mode = #tpu.pipeline_mode<synchronous>, transform_indices = @transform_2, window_bounds = array<i64: 32, 1>}, {pipeline_mode = #tpu.pipeline_mode<synchronous>, transform_indices = @transform_3, window_bounds = array<i64: 32, 32>}, {pipeline_mode = #tpu.pipeline_mode<synchronous>, transform_indices = @transform_4, window_bounds = array<i64: 32, 1>}, {pipeline_mode = #tpu.pipeline_mode<synchronous>, transform_indices = @transform_5, window_bounds = array<i64: 32, 48>}, {pipeline_mode = #tpu.pipeline_mode<synchronous>, transform_indices = @transform_6, window_bounds = array<i64: 32, 1>}, {pipeline_mode = #tpu.pipeline_mode<synchronous>, transform_indices = @transform_7, window_bounds = array<i64: 8, 32>}, {pipeline_mode = #tpu.pipeline_mode<synchronous>, transform_indices = @transform_8, window_bounds = array<i64: 8, 1>}, {transform_indices = @transform_9, window_bounds = array<i64: 1, 8, 256>}]} {
    %c0 = arith.constant 0 : index
    %c0_0 = arith.constant 0 : index
    %c0_1 = arith.constant 0 : index
    %0 = vector.load %arg2[%c0, %c0_0, %c0_1] : memref<1x16x256xf32, #tpu.memory_space<vmem>>, vector<1x16x256xf32>
    %1 = vector.shape_cast %0 : vector<1x16x256xf32> to vector<16x256xf32>
    %c0_2 = arith.constant 0 : index
    %c0_3 = arith.constant 0 : index
    %2 = vector.load %arg3[%c0_2, %c0_3] : memref<32x16xf32, #tpu.memory_space<vmem>>, vector<32x16xf32>
    %c0_4 = arith.constant 0 : index
    %c0_5 = arith.constant 0 : index
    %3 = vector.load %arg4[%c0_4, %c0_5] : memref<32x1xf32, #tpu.memory_space<vmem>>, vector<32x1xf32>
    %cst = arith.constant dense<0.000000e+00> : vector<32x256xf32>
    %4 = tpu.matmul %2, %1, %cst {dimension_numbers = #tpu.dot_dimension_numbers<[1], [0], [0], [1], [0, 0, 1, 1], [], []>} : vector<32x16xf32>, vector<16x256xf32>, vector<32x256xf32> -> vector<32x256xf32>
    %5 = vector.broadcast %3 : vector<32x1xf32> to vector<32x256xf32>
    %6 = arith.addf %4, %5 : vector<32x256xf32>
    %cst_6 = arith.constant 0.000000e+00 : f32
    %7 = vector.broadcast %cst_6 : f32 to vector<32x256xf32>
    %8 = arith.cmpf ogt, %6, %7 : vector<32x256xf32>
    %cst_7 = arith.constant 0.00999999977 : f32
    %9 = vector.broadcast %cst_7 : f32 to vector<32x256xf32>
    %10 = arith.mulf %9, %6 : vector<32x256xf32>
    %11 = arith.select %8, %6, %10 : vector<32x256xi1>, vector<32x256xf32>
    %c0_8 = arith.constant 0 : index
    %c0_9 = arith.constant 0 : index
    %12 = vector.load %arg5[%c0_8, %c0_9] : memref<32x32xf32, #tpu.memory_space<vmem>>, vector<32x32xf32>
    %c0_10 = arith.constant 0 : index
    %c0_11 = arith.constant 0 : index
    %13 = vector.load %arg6[%c0_10, %c0_11] : memref<32x1xf32, #tpu.memory_space<vmem>>, vector<32x1xf32>
    %cst_12 = arith.constant dense<0.000000e+00> : vector<32x256xf32>
    %14 = tpu.matmul %12, %11, %cst_12 {dimension_numbers = #tpu.dot_dimension_numbers<[1], [0], [0], [1], [0, 0, 1, 1], [], []>} : vector<32x32xf32>, vector<32x256xf32>, vector<32x256xf32> -> vector<32x256xf32>
    %15 = vector.broadcast %13 : vector<32x1xf32> to vector<32x256xf32>
    %16 = arith.addf %14, %15 : vector<32x256xf32>
    %cst_13 = arith.constant 0.000000e+00 : f32
    %17 = vector.broadcast %cst_13 : f32 to vector<32x256xf32>
    %18 = arith.cmpf ogt, %16, %17 : vector<32x256xf32>
    %cst_14 = arith.constant 0.00999999977 : f32
    %19 = vector.broadcast %cst_14 : f32 to vector<32x256xf32>
    %20 = arith.mulf %19, %16 : vector<32x256xf32>
    %21 = arith.select %18, %16, %20 : vector<32x256xi1>, vector<32x256xf32>
    %c0_15 = arith.constant 0 : index
    %c0_16 = arith.constant 0 : index
    %22 = vector.load %arg7[%c0_15, %c0_16] : memref<32x48xf32, #tpu.memory_space<vmem>>, vector<32x48xf32>
    %c0_17 = arith.constant 0 : index
    %c0_18 = arith.constant 0 : index
    %23 = vector.load %arg8[%c0_17, %c0_18] : memref<32x1xf32, #tpu.memory_space<vmem>>, vector<32x1xf32>
    %24 = vector.extract_strided_slice %22 {offsets = [0, 0], sizes = [32, 32], strides = [1, 1]} : vector<32x48xf32> to vector<32x32xf32>
    %cst_19 = arith.constant dense<0.000000e+00> : vector<32x256xf32>
    %25 = tpu.matmul %24, %21, %cst_19 {dimension_numbers = #tpu.dot_dimension_numbers<[1], [0], [0], [1], [0, 0, 1, 1], [], []>} : vector<32x32xf32>, vector<32x256xf32>, vector<32x256xf32> -> vector<32x256xf32>
    %26 = vector.extract_strided_slice %22 {offsets = [0, 32], sizes = [32, 16], strides = [1, 1]} : vector<32x48xf32> to vector<32x16xf32>
    %cst_20 = arith.constant dense<0.000000e+00> : vector<32x256xf32>
    %27 = tpu.matmul %26, %1, %cst_20 {dimension_numbers = #tpu.dot_dimension_numbers<[1], [0], [0], [1], [0, 0, 1, 1], [], []>} : vector<32x16xf32>, vector<16x256xf32>, vector<32x256xf32> -> vector<32x256xf32>
    %28 = arith.addf %25, %27 : vector<32x256xf32>
    %29 = vector.broadcast %23 : vector<32x1xf32> to vector<32x256xf32>
    %30 = arith.addf %28, %29 : vector<32x256xf32>
    %cst_21 = arith.constant 0.000000e+00 : f32
    %31 = vector.broadcast %cst_21 : f32 to vector<32x256xf32>
    %32 = arith.cmpf ogt, %30, %31 : vector<32x256xf32>
    %cst_22 = arith.constant 0.00999999977 : f32
    %33 = vector.broadcast %cst_22 : f32 to vector<32x256xf32>
    %34 = arith.mulf %33, %30 : vector<32x256xf32>
    %35 = arith.select %32, %30, %34 : vector<32x256xi1>, vector<32x256xf32>
    %c0_23 = arith.constant 0 : index
    %c0_24 = arith.constant 0 : index
    %36 = vector.load %arg9[%c0_23, %c0_24] : memref<8x32xf32, #tpu.memory_space<vmem>>, vector<8x32xf32>
    %c0_25 = arith.constant 0 : index
    %c0_26 = arith.constant 0 : index
    %37 = vector.load %arg10[%c0_25, %c0_26] : memref<8x1xf32, #tpu.memory_space<vmem>>, vector<8x1xf32>
    %cst_27 = arith.constant dense<0.000000e+00> : vector<8x256xf32>
    %38 = tpu.matmul %36, %35, %cst_27 {dimension_numbers = #tpu.dot_dimension_numbers<[1], [0], [0], [1], [0, 0, 1, 1], [], []>} : vector<8x32xf32>, vector<32x256xf32>, vector<8x256xf32> -> vector<8x256xf32>
    %39 = vector.broadcast %37 : vector<8x1xf32> to vector<8x256xf32>
    %40 = arith.addf %38, %39 : vector<8x256xf32>
    %c0_28 = arith.constant 0 : index
    %c0_29 = arith.constant 0 : index
    %c0_30 = arith.constant 0 : index
    %41 = vector.load %arg11[%c0_28, %c0_29, %c0_30] : memref<1x8x256xf32, #tpu.memory_space<vmem>>, vector<1x8x256xf32>
    %42 = vector.shape_cast %41 : vector<1x8x256xf32> to vector<8x256xf32>
    %43 = vector.shape_cast %40 : vector<8x256xf32> to vector<1x8x256xf32>
    tpu.vector_store %arg11[%c0_28, %c0_29, %c0_30], %43 {strides = array<i32>} : memref<1x8x256xf32, #tpu.memory_space<vmem>>, vector<1x8x256xf32>,
    return
  }
  func.func @transform_0(%arg0: i32, %arg1: i32) -> (i32, i32, i32) {
    %c0_i32 = arith.constant 0 : i32
    %c0_i32_0 = arith.constant 0 : i32
    return %arg0, %c0_i32, %arg1 : i32, i32, i32
  }
  func.func @transform_1(%arg0: i32, %arg1: i32) -> (i32, i32) {
    %c0_i32 = arith.constant 0 : i32
    %c0_i32_0 = arith.constant 0 : i32
    %c0_i32_1 = arith.constant 0 : i32
    return %c0_i32, %c0_i32_0 : i32, i32
  }
  func.func @transform_2(%arg0: i32, %arg1: i32) -> (i32, i32) {
    %c0_i32 = arith.constant 0 : i32
    %c0_i32_0 = arith.constant 0 : i32
    %c0_i32_1 = arith.constant 0 : i32
    return %c0_i32, %c0_i32_0 : i32, i32
  }
  func.func @transform_3(%arg0: i32, %arg1: i32) -> (i32, i32) {
    %c0_i32 = arith.constant 0 : i32
    %c0_i32_0 = arith.constant 0 : i32
    %c0_i32_1 = arith.constant 0 : i32
    return %c0_i32, %c0_i32_0 : i32, i32
  }
  func.func @transform_4(%arg0: i32, %arg1: i32) -> (i32, i32) {
    %c0_i32 = arith.constant 0 : i32
    %c0_i32_0 = arith.constant 0 : i32
    %c0_i32_1 = arith.constant 0 : i32
    return %c0_i32, %c0_i32_0 : i32, i32
  }
  func.func @transform_5(%arg0: i32, %arg1: i32) -> (i32, i32) {
    %c0_i32 = arith.constant 0 : i32
    %c0_i32_0 = arith.constant 0 : i32
    %c0_i32_1 = arith.constant 0 : i32
    return %c0_i32, %c0_i32_0 : i32, i32
  }
  func.func @transform_6(%arg0: i32, %arg1: i32) -> (i32, i32) {
    %c0_i32 = arith.constant 0 : i32
    %c0_i32_0 = arith.constant 0 : i32
    %c0_i32_1 = arith.constant 0 : i32
    return %c0_i32, %c0_i32_0 : i32, i32
  }
  func.func @transform_7(%arg0: i32, %arg1: i32) -> (i32, i32) {
    %c0_i32 = arith.constant 0 : i32
    %c0_i32_0 = arith.constant 0 : i32
    %c0_i32_1 = arith.constant 0 : i32
    return %c0_i32, %c0_i32_0 : i32, i32
  }
  func.func @transform_8(%arg0: i32, %arg1: i32) -> (i32, i32) {
    %c0_i32 = arith.constant 0 : i32
    %c0_i32_0 = arith.constant 0 : i32
    %c0_i32_1 = arith.constant 0 : i32
    return %c0_i32, %c0_i32_0 : i32, i32
  }
  func.func @transform_9(%arg0: i32, %arg1: i32) -> (i32, i32, i32) {
    %c0_i32 = arith.constant 0 : i32
    %c0_i32_0 = arith.constant 0 : i32
    return %arg0, %c0_i32, %arg1 : i32, i32, i32
  }
}

</mosaic_0001>

<llo_original>
// kernel: tpu_custom_call.1
$region0: #{tpu_custom_call.1}
  #allocation0 [shape = 'u32[]', space=smem, size = 0x4, offset = 0x4, fixed_abs, tag = 'smem constant byte address 0x4 - core index']
  #allocation1 [shape = 'u32[144,128]{1,0:T(1,128)}', space=vmem, size = 0x12000, scoped, tag = 'internal scratch']
  %s0 = inlined_call_operand.vmem [shape: f32[2,16,256], index: 0, kind: input, shape index: {}]
  %s1 = inlined_call_operand.vmem [shape: f32[32,16], index: 1, kind: input, shape index: {}]
  %s2 = inlined_call_operand.vmem [shape: f32[32,1], index: 2, kind: input, shape index: {}]
  %s3 = inlined_call_operand.vmem [shape: f32[32,32], index: 3, kind: input, shape index: {}]
  %s4 = inlined_call_operand.vmem [shape: f32[32,1], index: 4, kind: input, shape index: {}]
  %s5 = inlined_call_operand.vmem [shape: f32[32,48], index: 5, kind: input, shape index: {}]
  %s6 = inlined_call_operand.vmem [shape: f32[32,1], index: 6, kind: input, shape index: {}]
  %s7 = inlined_call_operand.vmem [shape: f32[8,32], index: 7, kind: input, shape index: {}]
  %s8 = inlined_call_operand.vmem [shape: f32[8,1], index: 8, kind: input, shape index: {}]
  %s9 = inlined_call_operand.hbm [shape: f32[2,8,256], index: 9, kind: output, shape index: {}]
  %s10 = sld [smem:[#allocation0]]
  $region69: #{tpu_custom_call.1} parent=0
    _
  %s12 = ssub.s32 1, %s10
  %s13 = scalar_select 0, %s12, %s10
  $region1: #{tpu_custom_call.1} parent=0
    #allocation2 [shape = 'u8[16384]{0}', space=vmem, size = 0x4000, scoped, tag = 'output window, operand 0']
    #allocation3 [shape = 's32[2]{0}', space=sflag, size = 0x8, scoped, tag = 'scoped memory for tpu_custom_call.1']
    %14 = vsyncpa [#allocation3], 0
    %s15 = scalar_lea.sflag [#allocation3], 1
    %16 = vsyncpa %s15, 0
    loop: start=0, step=1, limit=4
    $region2: #{tpu_custom_call.1} parent=1 // loop_pre_header
      _
    $region3: #{tpu_custom_call.1} parent=1 // loop_header
      %s18 = sphi 0, %s22
      %p19 = scmp.ge.s32.totalorder %s18, 4
      %s25 = sphi 0, %s37
      %s26 = sphi 0, %s33
      %s27 = sphi 0, %s25
      %s28 = sphi 0, %s26
      %s29 = sphi 0, %s27
      %s30 = sphi 0, %s28
      %s42 = sphi 0, %s44
      %s45 = sphi 0, %s42
      %s46 = sphi 0, %s45
      %s62 = sphi 0, %s46
      %s66 = sphi 0, %s66
      %s68 = sphi 0, %s66
      %s69 = sphi 0, %s68
      %s83 = sphi 0, %s69
      %s87 = sphi 0, %s87
      %s89 = sphi 0, %s87
      %s90 = sphi 0, %s89
      %s104 = sphi 0, %s90
      %s108 = sphi 0, %s108
      %s110 = sphi 0, %s108
      %s111 = sphi 0, %s110
      %s125 = sphi 0, %s111
      %s129 = sphi 0, %s129
      %s131 = sphi 0, %s129
      %s132 = sphi 0, %s131
      %s146 = sphi 0, %s132
      %s150 = sphi 0, %s150
      %s152 = sphi 0, %s150
      %s153 = sphi 0, %s152
      %s167 = sphi 0, %s153
      %s171 = sphi 0, %s171
      %s173 = sphi 0, %s171
      %s174 = sphi 0, %s173
      %s188 = sphi 0, %s174
      %s192 = sphi 0, %s192
      %s194 = sphi 0, %s192
      %s195 = sphi 0, %s194
      %s209 = sphi 0, %s195
      %s213 = sphi 0, %s213
      %s215 = sphi 0, %s213
      %s216 = sphi 0, %s215
      %s230 = sphi 0, %s216
      %s238 = sphi 0, %s240
      %s241 = sphi 0, %s238
      %s242 = sphi 0, %s241
      %s258 = sphi 0, %s242
    $region4: #{tpu_custom_call.1} parent=1 // loop_header_branch
      %21 = sbr.rel (%p19) target = $region8
    $region5: #{tpu_custom_call.1} parent=1 // loop_body
      %s23 = ssub.s32 %s18, 1
      %s24 = ssub.s32 %s18, 2
      %s31 = sadd.s32 1, %s26
      %p32 = scmp.ge.s32.totalorder %s31, 1
      %s33 = scalar_select %p32, 0, %s31
      %s34 = sadd.s32 1, %s25
      %s35 = scalar_select %p32, %s34, %s25
      %p36 = scmp.ge.s32.totalorder %s35, 2
      %s37 = scalar_select %p36, 0, %s35
      %s38 = ssub.s32 %s25, %s37
      %s39 = ssub.s32 %s26, %s33
      %s40 = sor.u32 %s38, %s39
      %p41 = scmp.eq.s32.totalorder %s40, 0
      %s43 = sadd.s32 %s42, 1
      %s44 = scalar_select %p41, %s42, %s43
      %p47 = pneg %p41
      %p48 = scmp.eq.s32.totalorder %s18, 1
      %p49 = por %p47, %p48
      %p50 = scmp.ne.s32.totalorder %s42, %s45
      %p51 = scmp.eq.s32.totalorder %s18, 0
      %p52 = por %p50, %p51
      %p53 = scmp.ne.s32.totalorder %s42, %s45
      %p54 = scmp.eq.s32.totalorder %s23, 1
      %p55 = por %p53, %p54
      %p56 = scmp.ne.s32.totalorder %s45, %s46
      %p57 = scmp.eq.s32.totalorder %s23, 0
      %p58 = por %p56, %p57
      %p59 = scmp.ne.s32.totalorder %s45, %s46
      %p60 = scmp.eq.s32.totalorder %s24, 1
      %p61 = por %p59, %p60
      %p63 = scmp.ne.s32.totalorder %s46, %s62
      %p64 = scmp.eq.s32.totalorder %s24, 0
      %p65 = por %p63, %p64
      %s67 = sadd.s32 %s66, 1
      %p70 = scmp.eq.s32.totalorder %s18, 1
      %p71 = scmp.ne.s32.totalorder %s66, %s68
      %p72 = scmp.eq.s32.totalorder %s18, 0
      %p73 = por %p71, %p72
      %p74 = scmp.ne.s32.totalorder %s66, %s68
      %p75 = scmp.eq.s32.totalorder %s23, 1
      %p76 = por %p74, %p75
      %p77 = scmp.ne.s32.totalorder %s68, %s69
      %p78 = scmp.eq.s32.totalorder %s23, 0
      %p79 = por %p77, %p78
      %p80 = scmp.ne.s32.totalorder %s68, %s69
      %p81 = scmp.eq.s32.totalorder %s24, 1
      %p82 = por %p80, %p81
      %p84 = scmp.ne.s32.totalorder %s69, %s83
      %p85 = scmp.eq.s32.totalorder %s24, 0
      %p86 = por %p84, %p85
      %s88 = sadd.s32 %s87, 1
      %p91 = scmp.eq.s32.totalorder %s18, 1
      %p92 = scmp.ne.s32.totalorder %s87, %s89
      %p93 = scmp.eq.s32.totalorder %s18, 0
      %p94 = por %p92, %p93
      %p95 = scmp.ne.s32.totalorder %s87, %s89
      %p96 = scmp.eq.s32.totalorder %s23, 1
      %p97 = por %p95, %p96
      %p98 = scmp.ne.s32.totalorder %s89, %s90
      %p99 = scmp.eq.s32.totalorder %s23, 0
      %p100 = por %p98, %p99
      %p101 = scmp.ne.s32.totalorder %s89, %s90
      %p102 = scmp.eq.s32.totalorder %s24, 1
      %p103 = por %p101, %p102
      %p105 = scmp.ne.s32.totalorder %s90, %s104
      %p106 = scmp.eq.s32.totalorder %s24, 0
      %p107 = por %p105, %p106
      %s109 = sadd.s32 %s108, 1
      %p112 = scmp.eq.s32.totalorder %s18, 1
      %p113 = scmp.ne.s32.totalorder %s108, %s110
      %p114 = scmp.eq.s32.totalorder %s18, 0
      %p115 = por %p113, %p114
      %p116 = scmp.ne.s32.totalorder %s108, %s110
      %p117 = scmp.eq.s32.totalorder %s23, 1
      %p118 = por %p116, %p117
      %p119 = scmp.ne.s32.totalorder %s110, %s111
      %p120 = scmp.eq.s32.totalorder %s23, 0
      %p121 = por %p119, %p120
      %p122 = scmp.ne.s32.totalorder %s110, %s111
      %p123 = scmp.eq.s32.totalorder %s24, 1
      %p124 = por %p122, %p123
      %p126 = scmp.ne.s32.totalorder %s111, %s125
      %p127 = scmp.eq.s32.totalorder %s24, 0
      %p128 = por %p126, %p127
      %s130 = sadd.s32 %s129, 1
      %p133 = scmp.eq.s32.totalorder %s18, 1
      %p134 = scmp.ne.s32.totalorder %s129, %s131
      %p135 = scmp.eq.s32.totalorder %s18, 0
      %p136 = por %p134, %p135
      %p137 = scmp.ne.s32.totalorder %s129, %s131
      %p138 = scmp.eq.s32.totalorder %s23, 1
      %p139 = por %p137, %p138
      %p140 = scmp.ne.s32.totalorder %s131, %s132
      %p141 = scmp.eq.s32.totalorder %s23, 0
      %p142 = por %p140, %p141
      %p143 = scmp.ne.s32.totalorder %s131, %s132
      %p144 = scmp.eq.s32.totalorder %s24, 1
      %p145 = por %p143, %p144
      %p147 = scmp.ne.s32.totalorder %s132, %s146
      %p148 = scmp.eq.s32.totalorder %s24, 0
      %p149 = por %p147, %p148
      %s151 = sadd.s32 %s150, 1
      %p154 = scmp.eq.s32.totalorder %s18, 1
      %p155 = scmp.ne.s32.totalorder %s150, %s152
      %p156 = scmp.eq.s32.totalorder %s18, 0
      %p157 = por %p155, %p156
      %p158 = scmp.ne.s32.totalorder %s150, %s152
      %p159 = scmp.eq.s32.totalorder %s23, 1
      %p160 = por %p158, %p159
      %p161 = scmp.ne.s32.totalorder %s152, %s153
      %p162 = scmp.eq.s32.totalorder %s23, 0
      %p163 = por %p161, %p162
      %p164 = scmp.ne.s32.totalorder %s152, %s153
      %p165 = scmp.eq.s32.totalorder %s24, 1
      %p166 = por %p164, %p165
      %p168 = scmp.ne.s32.totalorder %s153, %s167
      %p169 = scmp.eq.s32.totalorder %s24, 0
      %p170 = por %p168, %p169
      %s172 = sadd.s32 %s171, 1
      %p175 = scmp.eq.s32.totalorder %s18, 1
      %p176 = scmp.ne.s32.totalorder %s171, %s173
      %p177 = scmp.eq.s32.totalorder %s18, 0
      %p178 = por %p176, %p177
      %p179 = scmp.ne.s32.totalorder %s171, %s173
      %p180 = scmp.eq.s32.totalorder %s23, 1
      %p181 = por %p179, %p180
      %p182 = scmp.ne.s32.totalorder %s173, %s174
      %p183 = scmp.eq.s32.totalorder %s23, 0
      %p184 = por %p182, %p183
      %p185 = scmp.ne.s32.totalorder %s173, %s174
      %p186 = scmp.eq.s32.totalorder %s24, 1
      %p187 = por %p185, %p186
      %p189 = scmp.ne.s32.totalorder %s174, %s188
      %p190 = scmp.eq.s32.totalorder %s24, 0
      %p191 = por %p189, %p190
      %s193 = sadd.s32 %s192, 1
      %p196 = scmp.eq.s32.totalorder %s18, 1
      %p197 = scmp.ne.s32.totalorder %s192, %s194
      %p198 = scmp.eq.s32.totalorder %s18, 0
      %p199 = por %p197, %p198
      %p200 = scmp.ne.s32.totalorder %s192, %s194
      %p201 = scmp.eq.s32.totalorder %s23, 1
      %p202 = por %p200, %p201
      %p203 = scmp.ne.s32.totalorder %s194, %s195
      %p204 = scmp.eq.s32.totalorder %s23, 0
      %p205 = por %p203, %p204
      %p206 = scmp.ne.s32.totalorder %s194, %s195
      %p207 = scmp.eq.s32.totalorder %s24, 1
      %p208 = por %p206, %p207
      %p210 = scmp.ne.s32.totalorder %s195, %s209
      %p211 = scmp.eq.s32.totalorder %s24, 0
      %p212 = por %p210, %p211
      %s214 = sadd.s32 %s213, 1
      %p217 = scmp.eq.s32.totalorder %s18, 1
      %p218 = scmp.ne.s32.totalorder %s213, %s215
      %p219 = scmp.eq.s32.totalorder %s18, 0
      %p220 = por %p218, %p219
      %p221 = scmp.ne.s32.totalorder %s213, %s215
      %p222 = scmp.eq.s32.totalorder %s23, 1
      %p223 = por %p221, %p222
      %p224 = scmp.ne.s32.totalorder %s215, %s216
      %p225 = scmp.eq.s32.totalorder %s23, 0
      %p226 = por %p224, %p225
      %p227 = scmp.ne.s32.totalorder %s215, %s216
      %p228 = scmp.eq.s32.totalorder %s24, 1
      %p229 = por %p227, %p228
      %p231 = scmp.ne.s32.totalorder %s216, %s230
      %p232 = scmp.eq.s32.totalorder %s24, 0
      %p233 = por %p231, %p232
      %s234 = ssub.s32 %s25, %s37
      %s235 = ssub.s32 %s26, %s33
      %s236 = sor.u32 %s234, %s235
      %p237 = scmp.eq.s32.totalorder %s236, 0
      %s239 = sadd.s32 %s238, 1
      %s240 = scalar_select %p237, %s238, %s239
      %p243 = pneg %p237
      %p244 = scmp.eq.s32.totalorder %s18, 1
      %p245 = por %p243, %p244
      %p246 = scmp.ne.s32.totalorder %s238, %s241
      %p247 = scmp.eq.s32.totalorder %s18, 0
      %p248 = por %p246, %p247
      %p249 = scmp.ne.s32.totalorder %s238, %s241
      %p250 = scmp.eq.s32.totalorder %s23, 1
      %p251 = por %p249, %p250
      %p252 = scmp.ne.s32.totalorder %s241, %s242
      %p253 = scmp.eq.s32.totalorder %s23, 0
      %p254 = por %p252, %p253
      %p255 = scmp.ne.s32.totalorder %s241, %s242
      %p256 = scmp.eq.s32.totalorder %s24, 1
      %p257 = por %p255, %p256
      %p259 = scmp.ne.s32.totalorder %s242, %s258
      %p260 = scmp.eq.s32.totalorder %s24, 0
      %p261 = por %p259, %p260
      %p262 = scmp.le.s32.totalorder 1, %s18
      %p263 = scmp.lt.s32.totalorder %s18, 3
      %p264 = pnand %p262, %p263
      %p265 = pneg %p264
      // Predicated region
      $region9: #{tpu_custom_call.1} parent=5 // pred_check
        _
      $region10: #{tpu_custom_call.1} parent=5 // pred_check_branch
        %267 = sbr.rel (%p264) target = $region12
      $region11: #{tpu_custom_call.1} parent=5 // pred_region
        %s268 = ssub.s32 %s18, 1
        // Predicated region
        $region13: #{tpu_custom_call.1} parent=11 // pred_check
          %p269 = pneg %p79
        $region14: #{tpu_custom_call.1} parent=11 // pred_check_branch
          %271 = sbr.rel (%p269) target = $region16
        $region15: #{tpu_custom_call.1} parent=11 // pred_region
          _
        $region16: #{tpu_custom_call.1} parent=11 // pred_fallthru
          _
        // Predicated region
        $region17: #{tpu_custom_call.1} parent=11 // pred_check
          %p272 = pneg %p100
        $region18: #{tpu_custom_call.1} parent=11 // pred_check_branch
          %274 = sbr.rel (%p272) target = $region20
        $region19: #{tpu_custom_call.1} parent=11 // pred_region
          _
        $region20: #{tpu_custom_call.1} parent=11 // pred_fallthru
          _
        // Predicated region
        $region21: #{tpu_custom_call.1} parent=11 // pred_check
          %p275 = pneg %p121
        $region22: #{tpu_custom_call.1} parent=11 // pred_check_branch
          %277 = sbr.rel (%p275) target = $region24
        $region23: #{tpu_custom_call.1} parent=11 // pred_region
          _
        $region24: #{tpu_custom_call.1} parent=11 // pred_fallthru
          _
        // Predicated region
        $region25: #{tpu_custom_call.1} parent=11 // pred_check
          %p278 = pneg %p142
        $region26: #{tpu_custom_call.1} parent=11 // pred_check_branch
          %280 = sbr.rel (%p278) target = $region28
        $region27: #{tpu_custom_call.1} parent=11 // pred_region
          _
        $region28: #{tpu_custom_call.1} parent=11 // pred_fallthru
          _
        // Predicated region
        $region29: #{tpu_custom_call.1} parent=11 // pred_check
          %p281 = pneg %p163
        $region30: #{tpu_custom_call.1} parent=11 // pred_check_branch
          %283 = sbr.rel (%p281) target = $region32
        $region31: #{tpu_custom_call.1} parent=11 // pred_region
          _
        $region32: #{tpu_custom_call.1} parent=11 // pred_fallthru
          _
        // Predicated region
        $region33: #{tpu_custom_call.1} parent=11 // pred_check
          %p284 = pneg %p184
        $region34: #{tpu_custom_call.1} parent=11 // pred_check_branch
          %286 = sbr.rel (%p284) target = $region36
        $region35: #{tpu_custom_call.1} parent=11 // pred_region
          _
        $region36: #{tpu_custom_call.1} parent=11 // pred_fallthru
          _
        // Predicated region
        $region37: #{tpu_custom_call.1} parent=11 // pred_check
          %p287 = pneg %p205
        $region38: #{tpu_custom_call.1} parent=11 // pred_check_branch
          %289 = sbr.rel (%p287) target = $region40
        $region39: #{tpu_custom_call.1} parent=11 // pred_region
          _
        $region40: #{tpu_custom_call.1} parent=11 // pred_fallthru
          _
        // Predicated region
        $region41: #{tpu_custom_call.1} parent=11 // pred_check
          %p290 = pneg %p226
        $region42: #{tpu_custom_call.1} parent=11 // pred_check_branch
          %292 = sbr.rel (%p290) target = $region44
        $region43: #{tpu_custom_call.1} parent=11 // pred_region
          _
        $region44: #{tpu_custom_call.1} parent=11 // pred_fallthru
          _
      $region12: #{tpu_custom_call.1} parent=5 // pred_fallthru
        _
      %p293 = scmp.lt.s32.totalorder %s18, 2
      // Predicated region
      $region45: #{tpu_custom_call.1} parent=5 // pred_check
        %p294 = pneg %p293
      $region46: #{tpu_custom_call.1} parent=5 // pred_check_branch
        %296 = sbr.rel (%p294) target = $region48
      $region47: #{tpu_custom_call.1} parent=5 // pred_region
        // Predicated region
        $region49: #{tpu_custom_call.1} parent=47 // pred_check
          %p297 = pneg %p52
        $region50: #{tpu_custom_call.1} parent=47 // pred_check_branch
          %299 = sbr.rel (%p297) target = $region52
        $region51: #{tpu_custom_call.1} parent=47 // pred_region
          %s300 = smul.u32 2, %s26
          %p301 = scmp.lt.s32.totalorder %s25, 1
          %s302 = scalar_select %p301, %s25, 1
          %p303 = scmp.lt.s32.totalorder %s300, 1
          %s304 = scalar_select %p303, %s300, 1
          %s305 = smul.addr %s302, 4
          %s306 = sadd.s32 %s304, %s305
          %s307 = smul.addr %s306, 8
          %s308 = scalar_lea.vmem %s0, %s307
          %s309 = smul.u32 2, %s26
        $region52: #{tpu_custom_call.1} parent=47 // pred_fallthru
          _
      $region48: #{tpu_custom_call.1} parent=5 // pred_fallthru
        _
      %p310 = scmp.le.s32.totalorder 1, %s18
      %p311 = scmp.lt.s32.totalorder %s18, 3
      %p312 = pnand %p310, %p311
      %p313 = pneg %p312
      // Predicated region
      $region53: #{tpu_custom_call.1} parent=5 // pred_check
        _
      $region54: #{tpu_custom_call.1} parent=5 // pred_check_branch
        %315 = sbr.rel (%p312) target = $region56
      $region55: #{tpu_custom_call.1} parent=5 // pred_region
        %s316 = ssub.s32 %s18, 1
        %s317 = smul.u32 2, %s28
        %p318 = scmp.lt.s32.totalorder %s27, 1
        %s319 = scalar_select %p318, %s27, 1
        %p320 = scmp.lt.s32.totalorder %s317, 1
        %s321 = scalar_select %p320, %s317, 1
        %s322 = smul.addr %s319, 4
        %s323 = sadd.s32 %s321, %s322
        %s324 = smul.addr %s323, 8
        %s325 = scalar_lea.vmem %s0, %s324
        %p326 = pneg %p58
        %p327 = pneg %p55
        %p328 = pneg %p79
        %p329 = pneg %p76
        %p330 = pneg %p100
        %p331 = pneg %p97
        %p332 = pneg %p121
        %p333 = pneg %p118
        %p334 = pneg %p142
        %p335 = pneg %p139
        %p336 = pneg %p163
        %p337 = pneg %p160
        %p338 = pneg %p184
        %p339 = pneg %p181
        %p340 = pneg %p205
        %p341 = pneg %p202
        %p342 = pneg %p226
        %p343 = pneg %p223
        %p344 = pneg %p254
        %p345 = pneg %p251
        %s346 = sand.u32 %s241, 1
        %s347 = scalar_lea.sflag [#allocation3], %s346
        %s348 = sand.u32 %s241, 1
        %s349 = smul.addr %s348, 16
        %s350 = scalar_lea.vmem [#allocation2], %s349
        %s351 = smul.u32 2, %s28
        %p352 = scmp.lt.s32.totalorder %s27, 1
        %s353 = scalar_select %p352, %s27, 1
        %p354 = scmp.lt.s32.totalorder %s351, 1
        %s355 = scalar_select %p354, %s351, 1
        %s356 = smul.addr %s353, 4
        %s357 = sadd.s32 %s355, %s356
        %s358 = smul.addr %s357, 8
        %s359 = scalar_lea.vmem %s0, %s358
        %s360 = smul.u32 2, %s28
        %s361 = smul.u32 2, %s28
        %v362 = vld [vmem:[%s359] sm:$0xff]
        %v363 = vld [vmem:[%s359 + $0x8] sm:$0xff]
        %v364 = vld [vmem:[%s359 + $0x10] sm:$0xff]
        %v365 = vld [vmem:[%s359 + $0x18] sm:$0xff]
        %v366 = vld [vmem:[%s1] sm:$0xff]
        %v367 = vld [vmem:[%s1 + $0x8] sm:$0xff]
        %v368 = vld [vmem:[%s1 + $0x10] sm:$0xff]
        %v369 = vld [vmem:[%s1 + $0x18] sm:$0xff]
        %v370 = vld [vmem:[%s2] sm:$0xff]
        %v371 = vld [vmem:[%s2 + $0x8] sm:$0xff]
        %v372 = vld [vmem:[%s2 + $0x10] sm:$0xff]
        %v373 = vld [vmem:[%s2 + $0x18] sm:$0xff]
        %375 = vset.pattern.permute.xlu0 0
        %376 = vperm.xlu0 %375, %v370
        %v377 = vpop.permute.xlu0 %376
        %380 = vset.pattern.permute.xlu0 0
        %381 = vperm.xlu0 %380, %v371
        %v382 = vpop.permute.xlu0 %381
        %385 = vset.pattern.permute.xlu0 0
        %386 = vperm.xlu0 %385, %v372
        %v387 = vpop.permute.xlu0 %386
        %390 = vset.pattern.permute.xlu0 0
        %391 = vperm.xlu0 %390, %v373
        %v392 = vpop.permute.xlu0 %391
        %vm394 = vcmask 130048
        %v396 = vsel %vm394, %v366, 0
        %v399 = vsel %vm394, %v367, 0
        %v402 = vsel %vm394, %v368, 0
        %v405 = vsel %vm394, %v369, 0
        %407 = vmatprep.subr.mxu0 0.0
        %408 = vmatpush1.msra.mxu0 0.0
        %409 = vmatprep.subr.mxu0 0.0
        %410 = vmatpush1.msra.mxu0 0.0
        %411 = vmatprep.subr.mxu0 0.0
        %412 = vmatpush1.msra.mxu0 0.0
        %413 = vmatprep.subr.mxu0 0.0
        %414 = vmatpush1.msra.mxu0 0.0
        %415 = vmatprep.subr.mxu0 0.0
        %416 = vmatpush1.msra.mxu0 0.0
        %417 = vmatprep.subr.mxu0 0.0
        %418 = vmatpush1.msra.mxu0 0.0
        %419 = vmatprep.subr.mxu0 0.0
        %420 = vmatpush1.msra.mxu0 0.0
        %421 = vmatprep.subr.mxu0 0.0
        %422 = vmatpush1.msra.mxu0 0.0
        %423 = vmatprep.subr.mxu0 0.0
        %424 = vmatpush1.msra.mxu0 0.0
        %425 = vmatprep.subr.mxu0 0.0
        %426 = vmatpush1.msra.mxu0 0.0
        %427 = vmatprep.subr.mxu0 0.0
        %428 = vmatpush1.msra.mxu0 0.0
        %429 = vmatprep.subr.mxu0 0.0
        %430 = vmatpush1.msra.mxu0 0.0
        %431 = vmatprep.subr.mxu0 0.0
        %432 = vmatpush1.msra.mxu0 0.0
        %433 = vmatprep.subr.mxu0 0.0
        %434 = vmatpush1.msra.mxu0 0.0
        %435 = vmatprep.subr.mxu0 %v365
        %436 = vmatpush1.msra.mxu0 %v364
        %437 = vmatprep.subr.mxu0 %v363
        %438 = vmatpush1.msra.mxu0 %v362
        %439 = vmatprep.subr.mxu0 0.0
        %440 = vmatpush2.msra.mxu0 0.0
        %441 = vmatprep.subr.mxu0 0.0
        %442 = vmatpush2.msra.mxu0 0.0
        %443 = vmatprep.subr.mxu0 0.0
        %444 = vmatpush2.msra.mxu0 0.0
        %445 = vmatprep.subr.mxu0 0.0
        %446 = vmatpush2.msra.mxu0 0.0
        %447 = vmatprep.subr.mxu0 0.0
        %448 = vmatpush2.msra.mxu0 0.0
        %449 = vmatprep.subr.mxu0 0.0
        %450 = vmatpush2.msra.mxu0 0.0
        %451 = vmatprep.subr.mxu0 0.0
        %452 = vmatpush2.msra.mxu0 0.0
        %453 = vmatprep.subr.mxu0 0.0
        %454 = vmatpush2.msra.mxu0 0.0
        %455 = vmatprep.subr.mxu0 0.0
        %456 = vmatpush2.msra.mxu0 0.0
        %457 = vmatprep.subr.mxu0 0.0
        %458 = vmatpush2.msra.mxu0 0.0
        %459 = vmatprep.subr.mxu0 0.0
        %460 = vmatpush2.msra.mxu0 0.0
        %461 = vmatprep.subr.mxu0 0.0
        %462 = vmatpush2.msra.mxu0 0.0
        %463 = vmatprep.subr.mxu0 0.0
        %464 = vmatpush2.msra.mxu0 0.0
        %465 = vmatprep.subr.mxu0 0.0
        %466 = vmatpush2.msra.mxu0 0.0
        %467 = vmatprep.subr.mxu0 0.0
        %468 = vmatpush2.msra.mxu0 0.0
        %469 = vmatprep.subr.mxu0 0.0
        %470 = vmatpush2.msra.mxu0 0.0
        %471 = vmatprep.mubr.f32.mxu0 0.0
        %472 = vmatmul.mubr.f32.gmra.mxu0 %v396
        %v473 = vpop.f32.mrf.mxu0
        %v474 = vadd.f32 %v377, %v473
        %v475 = vpop.f32.mrf.mxu0
        %v476 = vadd.f32 %v377, %v475
        %477 = vmatprep.mubr.f32.mxu0 0.0
        %478 = vmatmul.mubr.f32.gmra.mxu0 %v399
        %v479 = vpop.f32.mrf.mxu0
        %v480 = vadd.f32 %v382, %v479
        %v481 = vpop.f32.mrf.mxu0
        %v482 = vadd.f32 %v382, %v481
        %483 = vmatprep.mubr.f32.mxu0 0.0
        %484 = vmatmul.mubr.f32.gmra.mxu0 %v402
        %v485 = vpop.f32.mrf.mxu0
        %v486 = vadd.f32 %v387, %v485
        %v487 = vpop.f32.mrf.mxu0
        %v488 = vadd.f32 %v387, %v487
        %489 = vmatprep.mubr.f32.mxu0 0.0
        %490 = vmatmul.mubr.f32.gmra.mxu0 %v405
        %v491 = vpop.f32.mrf.mxu0
        %v492 = vadd.f32 %v392, %v491
        %v493 = vpop.f32.mrf.mxu0
        %v494 = vadd.f32 %v392, %v493
        %495 = vdwg.mxu0
        %vm496 = vcmp.gt.f32.partialorder %v474, 0.0
        %vm497 = vcmp.gt.f32.partialorder %v476, 0.0
        %vm498 = vcmp.gt.f32.partialorder %v480, 0.0
        %vm499 = vcmp.gt.f32.partialorder %v482, 0.0
        %vm500 = vcmp.gt.f32.partialorder %v486, 0.0
        %vm501 = vcmp.gt.f32.partialorder %v488, 0.0
        %vm502 = vcmp.gt.f32.partialorder %v492, 0.0
        %vm503 = vcmp.gt.f32.partialorder %v494, 0.0
        %v504 = vmul.f32 %v474, 0.01
        %v505 = vmul.f32 %v476, 0.01
        %v506 = vmul.f32 %v480, 0.01
        %v507 = vmul.f32 %v482, 0.01
        %v508 = vmul.f32 %v486, 0.01
        %v509 = vmul.f32 %v488, 0.01
        %v510 = vmul.f32 %v492, 0.01
        %v511 = vmul.f32 %v494, 0.01
        %v512 = vsel %vm496, %v474, %v504
        %v513 = vsel %vm497, %v476, %v505
        %v514 = vsel %vm498, %v480, %v506
        %v515 = vsel %vm499, %v482, %v507
        %v516 = vsel %vm500, %v486, %v508
        %v517 = vsel %vm501, %v488, %v509
        %v518 = vsel %vm502, %v492, %v510
        %v519 = vsel %vm503, %v494, %v511
        %v520 = vld [vmem:[%s3] sm:$0xff]
        %v521 = vld [vmem:[%s3 + $0x8] sm:$0xff]
        %v522 = vld [vmem:[%s3 + $0x10] sm:$0xff]
        %v523 = vld [vmem:[%s3 + $0x18] sm:$0xff]
        %v524 = vld [vmem:[%s4] sm:$0xff]
        %v525 = vld [vmem:[%s4 + $0x8] sm:$0xff]
        %v526 = vld [vmem:[%s4 + $0x10] sm:$0xff]
        %v527 = vld [vmem:[%s4 + $0x18] sm:$0xff]
        %529 = vset.pattern.permute.xlu0 0
        %530 = vperm.xlu0 %529, %v524
        %v531 = vpop.permute.xlu0 %530
        %534 = vset.pattern.permute.xlu0 0
        %535 = vperm.xlu0 %534, %v525
        %v536 = vpop.permute.xlu0 %535
        %539 = vset.pattern.permute.xlu0 0
        %540 = vperm.xlu0 %539, %v526
        %v541 = vpop.permute.xlu0 %540
        %544 = vset.pattern.permute.xlu0 0
        %545 = vperm.xlu0 %544, %v527
        %v546 = vpop.permute.xlu0 %545
        %vm548 = vcmask 261120
        %v550 = vsel %vm548, %v520, 0
        %v553 = vsel %vm548, %v521, 0
        %v556 = vsel %vm548, %v522, 0
        %v559 = vsel %vm548, %v523, 0
        %561 = vmatprep.subr.mxu0 0.0
        %562 = vmatpush1.msra.mxu0 0.0
        %563 = vmatprep.subr.mxu0 0.0
        %564 = vmatpush1.msra.mxu0 0.0
        %565 = vmatprep.subr.mxu0 0.0
        %566 = vmatpush1.msra.mxu0 0.0
        %567 = vmatprep.subr.mxu0 0.0
        %568 = vmatpush1.msra.mxu0 0.0
        %569 = vmatprep.subr.mxu0 0.0
        %570 = vmatpush1.msra.mxu0 0.0
        %571 = vmatprep.subr.mxu0 0.0
        %572 = vmatpush1.msra.mxu0 0.0
        %573 = vmatprep.subr.mxu0 0.0
        %574 = vmatpush1.msra.mxu0 0.0
        %575 = vmatprep.subr.mxu0 0.0
        %576 = vmatpush1.msra.mxu0 0.0
        %577 = vmatprep.subr.mxu0 0.0
        %578 = vmatpush1.msra.mxu0 0.0
        %579 = vmatprep.subr.mxu0 0.0
        %580 = vmatpush1.msra.mxu0 0.0
        %581 = vmatprep.subr.mxu0 0.0
        %582 = vmatpush1.msra.mxu0 0.0
        %583 = vmatprep.subr.mxu0 0.0
        %584 = vmatpush1.msra.mxu0 0.0
        %585 = vmatprep.subr.mxu0 %v519
        %586 = vmatpush1.msra.mxu0 %v518
        %587 = vmatprep.subr.mxu0 %v517
        %588 = vmatpush1.msra.mxu0 %v516
        %589 = vmatprep.subr.mxu0 %v515
        %590 = vmatpush1.msra.mxu0 %v514
        %591 = vmatprep.subr.mxu0 %v513
        %592 = vmatpush1.msra.mxu0 %v512
        %593 = vmatprep.subr.mxu0 0.0
        %594 = vmatpush2.msra.mxu0 0.0
        %595 = vmatprep.subr.mxu0 0.0
        %596 = vmatpush2.msra.mxu0 0.0
        %597 = vmatprep.subr.mxu0 0.0
        %598 = vmatpush2.msra.mxu0 0.0
        %599 = vmatprep.subr.mxu0 0.0
        %600 = vmatpush2.msra.mxu0 0.0
        %601 = vmatprep.subr.mxu0 0.0
        %602 = vmatpush2.msra.mxu0 0.0
        %603 = vmatprep.subr.mxu0 0.0
        %604 = vmatpush2.msra.mxu0 0.0
        %605 = vmatprep.subr.mxu0 0.0
        %606 = vmatpush2.msra.mxu0 0.0
        %607 = vmatprep.subr.mxu0 0.0
        %608 = vmatpush2.msra.mxu0 0.0
        %609 = vmatprep.subr.mxu0 0.0
        %610 = vmatpush2.msra.mxu0 0.0
        %611 = vmatprep.subr.mxu0 0.0
        %612 = vmatpush2.msra.mxu0 0.0
        %613 = vmatprep.subr.mxu0 0.0
        %614 = vmatpush2.msra.mxu0 0.0
        %615 = vmatprep.subr.mxu0 0.0
        %616 = vmatpush2.msra.mxu0 0.0
        %617 = vmatprep.subr.mxu0 0.0
        %618 = vmatpush2.msra.mxu0 0.0
        %619 = vmatprep.subr.mxu0 0.0
        %620 = vmatpush2.msra.mxu0 0.0
        %621 = vmatprep.subr.mxu0 0.0
        %622 = vmatpush2.msra.mxu0 0.0
        %623 = vmatprep.subr.mxu0 0.0
        %624 = vmatpush2.msra.mxu0 0.0
        %625 = vmatprep.mubr.f32.mxu0 0.0
        %626 = vmatmul.mubr.f32.gmra.mxu0 %v550
        %v627 = vpop.f32.mrf.mxu0
        %v628 = vadd.f32 %v531, %v627
        %v629 = vpop.f32.mrf.mxu0
        %v630 = vadd.f32 %v531, %v629
        %631 = vmatprep.mubr.f32.mxu0 0.0
        %632 = vmatmul.mubr.f32.gmra.mxu0 %v553
        %v633 = vpop.f32.mrf.mxu0
        %v634 = vadd.f32 %v536, %v633
        %v635 = vpop.f32.mrf.mxu0
        %v636 = vadd.f32 %v536, %v635
        %637 = vmatprep.mubr.f32.mxu0 0.0
        %638 = vmatmul.mubr.f32.gmra.mxu0 %v556
        %v639 = vpop.f32.mrf.mxu0
        %v640 = vadd.f32 %v541, %v639
        %v641 = vpop.f32.mrf.mxu0
        %v642 = vadd.f32 %v541, %v641
        %643 = vmatprep.mubr.f32.mxu0 0.0
        %644 = vmatmul.mubr.f32.gmra.mxu0 %v559
        %v645 = vpop.f32.mrf.mxu0
        %v646 = vadd.f32 %v546, %v645
        %v647 = vpop.f32.mrf.mxu0
        %v648 = vadd.f32 %v546, %v647
        %649 = vdwg.mxu0
        %vm650 = vcmp.gt.f32.partialorder %v628, 0.0
        %vm651 = vcmp.gt.f32.partialorder %v630, 0.0
        %vm652 = vcmp.gt.f32.partialorder %v634, 0.0
        %vm653 = vcmp.gt.f32.partialorder %v636, 0.0
        %vm654 = vcmp.gt.f32.partialorder %v640, 0.0
        %vm655 = vcmp.gt.f32.partialorder %v642, 0.0
        %vm656 = vcmp.gt.f32.partialorder %v646, 0.0
        %vm657 = vcmp.gt.f32.partialorder %v648, 0.0
        %v658 = vmul.f32 %v628, 0.01
        %v659 = vmul.f32 %v630, 0.01
        %v660 = vmul.f32 %v634, 0.01
        %v661 = vmul.f32 %v636, 0.01
        %v662 = vmul.f32 %v640, 0.01
        %v663 = vmul.f32 %v642, 0.01
        %v664 = vmul.f32 %v646, 0.01
        %v665 = vmul.f32 %v648, 0.01
        %v666 = vsel %vm650, %v628, %v658
        %v667 = vsel %vm651, %v630, %v659
        %v668 = vsel %vm652, %v634, %v660
        %v669 = vsel %vm653, %v636, %v661
        %v670 = vsel %vm654, %v640, %v662
        %v671 = vsel %vm655, %v642, %v663
        %v672 = vsel %vm656, %v646, %v664
        %v673 = vsel %vm657, %v648, %v665
        %v674 = vld [vmem:[%s5] sm:$0xff]
        %v675 = vld [vmem:[%s5 + $0x8] sm:$0xff]
        %v676 = vld [vmem:[%s5 + $0x10] sm:$0xff]
        %v677 = vld [vmem:[%s5 + $0x18] sm:$0xff]
        %v678 = vld [vmem:[%s6] sm:$0xff]
        %v679 = vld [vmem:[%s6 + $0x8] sm:$0xff]
        %v680 = vld [vmem:[%s6 + $0x10] sm:$0xff]
        %v681 = vld [vmem:[%s6 + $0x18] sm:$0xff]
        %686 = vrot.lane.b32.xlu0 %v674, 96
        %v687 = vpop.permute.xlu0 %686
        %688 = vrot.lane.b32.xlu0 %v675, 96
        %v689 = vpop.permute.xlu0 %688
        %690 = vrot.lane.b32.xlu0 %v676, 96
        %v691 = vpop.permute.xlu0 %690
        %692 = vrot.lane.b32.xlu0 %v677, 96
        %v693 = vpop.permute.xlu0 %692
        %v694 = vsel %vm394, %v687, 0
        %v696 = vsel %vm394, %v689, 0
        %v698 = vsel %vm394, %v691, 0
        %v700 = vsel %vm394, %v693, 0
        %702 = vmatprep.subr.mxu0 0.0
        %703 = vmatpush1.msra.mxu0 0.0
        %704 = vmatprep.subr.mxu0 0.0
        %705 = vmatpush1.msra.mxu0 0.0
        %706 = vmatprep.subr.mxu0 0.0
        %707 = vmatpush1.msra.mxu0 0.0
        %708 = vmatprep.subr.mxu0 0.0
        %709 = vmatpush1.msra.mxu0 0.0
        %710 = vmatprep.subr.mxu0 0.0
        %711 = vmatpush1.msra.mxu0 0.0
        %712 = vmatprep.subr.mxu0 0.0
        %713 = vmatpush1.msra.mxu0 0.0
        %714 = vmatprep.subr.mxu0 0.0
        %715 = vmatpush1.msra.mxu0 0.0
        %716 = vmatprep.subr.mxu0 0.0
        %717 = vmatpush1.msra.mxu0 0.0
        %718 = vmatprep.subr.mxu0 0.0
        %719 = vmatpush1.msra.mxu0 0.0
        %720 = vmatprep.subr.mxu0 0.0
        %721 = vmatpush1.msra.mxu0 0.0
        %722 = vmatprep.subr.mxu0 0.0
        %723 = vmatpush1.msra.mxu0 0.0
        %724 = vmatprep.subr.mxu0 0.0
        %725 = vmatpush1.msra.mxu0 0.0
        %726 = vmatprep.subr.mxu0 0.0
        %727 = vmatpush1.msra.mxu0 0.0
        %728 = vmatprep.subr.mxu0 0.0
        %729 = vmatpush1.msra.mxu0 0.0
        %730 = vmatprep.subr.mxu0 %v365
        %731 = vmatpush1.msra.mxu0 %v364
        %732 = vmatprep.subr.mxu0 %v363
        %733 = vmatpush1.msra.mxu0 %v362
        %734 = vmatprep.subr.mxu0 0.0
        %735 = vmatpush2.msra.mxu0 0.0
        %736 = vmatprep.subr.mxu0 0.0
        %737 = vmatpush2.msra.mxu0 0.0
        %738 = vmatprep.subr.mxu0 0.0
        %739 = vmatpush2.msra.mxu0 0.0
        %740 = vmatprep.subr.mxu0 0.0
        %741 = vmatpush2.msra.mxu0 0.0
        %742 = vmatprep.subr.mxu0 0.0
        %743 = vmatpush2.msra.mxu0 0.0
        %744 = vmatprep.subr.mxu0 0.0
        %745 = vmatpush2.msra.mxu0 0.0
        %746 = vmatprep.subr.mxu0 0.0
        %747 = vmatpush2.msra.mxu0 0.0
        %748 = vmatprep.subr.mxu0 0.0
        %749 = vmatpush2.msra.mxu0 0.0
        %750 = vmatprep.subr.mxu0 0.0
        %751 = vmatpush2.msra.mxu0 0.0
        %752 = vmatprep.subr.mxu0 0.0
        %753 = vmatpush2.msra.mxu0 0.0
        %754 = vmatprep.subr.mxu0 0.0
        %755 = vmatpush2.msra.mxu0 0.0
        %756 = vmatprep.subr.mxu0 0.0
        %757 = vmatpush2.msra.mxu0 0.0
        %758 = vmatprep.subr.mxu0 0.0
        %759 = vmatpush2.msra.mxu0 0.0
        %760 = vmatprep.subr.mxu0 0.0
        %761 = vmatpush2.msra.mxu0 0.0
        %762 = vmatprep.subr.mxu0 0.0
        %763 = vmatpush2.msra.mxu0 0.0
        %764 = vmatprep.subr.mxu0 0.0
        %765 = vmatpush2.msra.mxu0 0.0
        %766 = vmatprep.mubr.f32.mxu0 0.0
        %767 = vmatmul.mubr.f32.gmra.mxu0 %v694
        %v768 = vpop.f32.mrf.mxu0
        %v769 = vadd.f32 0.0, %v768
        %v770 = vpop.f32.mrf.mxu0
        %v771 = vadd.f32 0.0, %v770
        %772 = vmatprep.mubr.f32.mxu0 0.0
        %773 = vmatmul.mubr.f32.gmra.mxu0 %v696
        %v774 = vpop.f32.mrf.mxu0
        %v775 = vadd.f32 0.0, %v774
        %v776 = vpop.f32.mrf.mxu0
        %v777 = vadd.f32 0.0, %v776
        %778 = vmatprep.mubr.f32.mxu0 0.0
        %779 = vmatmul.mubr.f32.gmra.mxu0 %v698
        %v780 = vpop.f32.mrf.mxu0
        %v781 = vadd.f32 0.0, %v780
        %v782 = vpop.f32.mrf.mxu0
        %v783 = vadd.f32 0.0, %v782
        %784 = vmatprep.mubr.f32.mxu0 0.0
        %785 = vmatmul.mubr.f32.gmra.mxu0 %v700
        %v786 = vpop.f32.mrf.mxu0
        %v787 = vadd.f32 0.0, %v786
        %v788 = vpop.f32.mrf.mxu0
        %v789 = vadd.f32 0.0, %v788
        %790 = vdwg.mxu0
        %v791 = vsel %vm548, %v674, 0
        %v793 = vsel %vm548, %v675, 0
        %v795 = vsel %vm548, %v676, 0
        %v797 = vsel %vm548, %v677, 0
        %799 = vmatprep.subr.mxu0 0.0
        %800 = vmatpush1.msra.mxu0 0.0
        %801 = vmatprep.subr.mxu0 0.0
        %802 = vmatpush1.msra.mxu0 0.0
        %803 = vmatprep.subr.mxu0 0.0
        %804 = vmatpush1.msra.mxu0 0.0
        %805 = vmatprep.subr.mxu0 0.0
        %806 = vmatpush1.msra.mxu0 0.0
        %807 = vmatprep.subr.mxu0 0.0
        %808 = vmatpush1.msra.mxu0 0.0
        %809 = vmatprep.subr.mxu0 0.0
        %810 = vmatpush1.msra.mxu0 0.0
        %811 = vmatprep.subr.mxu0 0.0
        %812 = vmatpush1.msra.mxu0 0.0
        %813 = vmatprep.subr.mxu0 0.0
        %814 = vmatpush1.msra.mxu0 0.0
        %815 = vmatprep.subr.mxu0 0.0
        %816 = vmatpush1.msra.mxu0 0.0
        %817 = vmatprep.subr.mxu0 0.0
        %818 = vmatpush1.msra.mxu0 0.0
        %819 = vmatprep.subr.mxu0 0.0
        %820 = vmatpush1.msra.mxu0 0.0
        %821 = vmatprep.subr.mxu0 0.0
        %822 = vmatpush1.msra.mxu0 0.0
        %823 = vmatprep.subr.mxu0 %v673
        %824 = vmatpush1.msra.mxu0 %v672
        %825 = vmatprep.subr.mxu0 %v671
        %826 = vmatpush1.msra.mxu0 %v670
        %827 = vmatprep.subr.mxu0 %v669
        %828 = vmatpush1.msra.mxu0 %v668
        %829 = vmatprep.subr.mxu0 %v667
        %830 = vmatpush1.msra.mxu0 %v666
        %831 = vmatprep.subr.mxu0 0.0
        %832 = vmatpush2.msra.mxu0 0.0
        %833 = vmatprep.subr.mxu0 0.0
        %834 = vmatpush2.msra.mxu0 0.0
        %835 = vmatprep.subr.mxu0 0.0
        %836 = vmatpush2.msra.mxu0 0.0
        %837 = vmatprep.subr.mxu0 0.0
        %838 = vmatpush2.msra.mxu0 0.0
        %839 = vmatprep.subr.mxu0 0.0
        %840 = vmatpush2.msra.mxu0 0.0
        %841 = vmatprep.subr.mxu0 0.0
        %842 = vmatpush2.msra.mxu0 0.0
        %843 = vmatprep.subr.mxu0 0.0
        %844 = vmatpush2.msra.mxu0 0.0
        %845 = vmatprep.subr.mxu0 0.0
        %846 = vmatpush2.msra.mxu0 0.0
        %847 = vmatprep.subr.mxu0 0.0
        %848 = vmatpush2.msra.mxu0 0.0
        %849 = vmatprep.subr.mxu0 0.0
        %850 = vmatpush2.msra.mxu0 0.0
        %851 = vmatprep.subr.mxu0 0.0
        %852 = vmatpush2.msra.mxu0 0.0
        %853 = vmatprep.subr.mxu0 0.0
        %854 = vmatpush2.msra.mxu0 0.0
        %855 = vmatprep.subr.mxu0 0.0
        %856 = vmatpush2.msra.mxu0 0.0
        %857 = vmatprep.subr.mxu0 0.0
        %858 = vmatpush2.msra.mxu0 0.0
        %859 = vmatprep.subr.mxu0 0.0
        %860 = vmatpush2.msra.mxu0 0.0
        %861 = vmatprep.subr.mxu0 0.0
        %862 = vmatpush2.msra.mxu0 0.0
        %863 = vmatprep.mubr.f32.mxu0 0.0
        %864 = vmatmul.mubr.f32.gmra.mxu0 %v791
        %v865 = vpop.f32.mrf.mxu0
        %v866 = vadd.f32 %v769, %v865
        %v867 = vpop.f32.mrf.mxu0
        %v868 = vadd.f32 %v771, %v867
        %869 = vmatprep.mubr.f32.mxu0 0.0
        %870 = vmatmul.mubr.f32.gmra.mxu0 %v793
        %v871 = vpop.f32.mrf.mxu0
        %v872 = vadd.f32 %v775, %v871
        %v873 = vpop.f32.mrf.mxu0
        %v874 = vadd.f32 %v777, %v873
        %875 = vmatprep.mubr.f32.mxu0 0.0
        %876 = vmatmul.mubr.f32.gmra.mxu0 %v795
        %v877 = vpop.f32.mrf.mxu0
        %v878 = vadd.f32 %v781, %v877
        %v879 = vpop.f32.mrf.mxu0
        %v880 = vadd.f32 %v783, %v879
        %881 = vmatprep.mubr.f32.mxu0 0.0
        %882 = vmatmul.mubr.f32.gmra.mxu0 %v797
        %v883 = vpop.f32.mrf.mxu0
        %v884 = vadd.f32 %v787, %v883
        %v885 = vpop.f32.mrf.mxu0
        %v886 = vadd.f32 %v789, %v885
        %887 = vdwg.mxu0
        %889 = vset.pattern.permute.xlu0 0
        %890 = vperm.xlu0 %889, %v678
        %v891 = vpop.permute.xlu0 %890
        %894 = vset.pattern.permute.xlu0 0
        %895 = vperm.xlu0 %894, %v679
        %v896 = vpop.permute.xlu0 %895
        %899 = vset.pattern.permute.xlu0 0
        %900 = vperm.xlu0 %899, %v680
        %v901 = vpop.permute.xlu0 %900
        %904 = vset.pattern.permute.xlu0 0
        %905 = vperm.xlu0 %904, %v681
        %v906 = vpop.permute.xlu0 %905
        %v908 = vadd.f32 %v866, %v891
        %v909 = vadd.f32 %v868, %v891
        %v910 = vadd.f32 %v872, %v896
        %v911 = vadd.f32 %v874, %v896
        %v912 = vadd.f32 %v878, %v901
        %v913 = vadd.f32 %v880, %v901
        %v914 = vadd.f32 %v884, %v906
        %v915 = vadd.f32 %v886, %v906
        %vm916 = vcmp.gt.f32.partialorder %v908, 0.0
        %vm917 = vcmp.gt.f32.partialorder %v909, 0.0
        %vm918 = vcmp.gt.f32.partialorder %v910, 0.0
        %vm919 = vcmp.gt.f32.partialorder %v911, 0.0
        %vm920 = vcmp.gt.f32.partialorder %v912, 0.0
        %vm921 = vcmp.gt.f32.partialorder %v913, 0.0
        %vm922 = vcmp.gt.f32.partialorder %v914, 0.0
        %vm923 = vcmp.gt.f32.partialorder %v915, 0.0
        %v924 = vmul.f32 %v908, 0.01
        %v925 = vmul.f32 %v909, 0.01
        %v926 = vmul.f32 %v910, 0.01
        %v927 = vmul.f32 %v911, 0.01
        %v928 = vmul.f32 %v912, 0.01
        %v929 = vmul.f32 %v913, 0.01
        %v930 = vmul.f32 %v914, 0.01
        %v931 = vmul.f32 %v915, 0.01
        %v932 = vsel %vm916, %v908, %v924
        %v933 = vsel %vm917, %v909, %v925
        %v934 = vsel %vm918, %v910, %v926
        %v935 = vsel %vm919, %v911, %v927
        %v936 = vsel %vm920, %v912, %v928
        %v937 = vsel %vm921, %v913, %v929
        %v938 = vsel %vm922, %v914, %v930
        %v939 = vsel %vm923, %v915, %v931
        %v940 = vld [vmem:[%s7] sm:$0xff]
        %v941 = vld [vmem:[%s8] sm:$0xff]
        %943 = vset.pattern.permute.xlu0 0
        %944 = vperm.xlu0 %943, %v941
        %v945 = vpop.permute.xlu0 %944
        %v948 = vsel %vm548, %v940, 0
        %950 = vmatprep.subr.mxu0 0.0
        %951 = vmatpush1.msra.mxu0 0.0
        %952 = vmatprep.subr.mxu0 0.0
        %953 = vmatpush1.msra.mxu0 0.0
        %954 = vmatprep.subr.mxu0 0.0
        %955 = vmatpush1.msra.mxu0 0.0
        %956 = vmatprep.subr.mxu0 0.0
        %957 = vmatpush1.msra.mxu0 0.0
        %958 = vmatprep.subr.mxu0 0.0
        %959 = vmatpush1.msra.mxu0 0.0
        %960 = vmatprep.subr.mxu0 0.0
        %961 = vmatpush1.msra.mxu0 0.0
        %962 = vmatprep.subr.mxu0 0.0
        %963 = vmatpush1.msra.mxu0 0.0
        %964 = vmatprep.subr.mxu0 0.0
        %965 = vmatpush1.msra.mxu0 0.0
        %966 = vmatprep.subr.mxu0 0.0
        %967 = vmatpush1.msra.mxu0 0.0
        %968 = vmatprep.subr.mxu0 0.0
        %969 = vmatpush1.msra.mxu0 0.0
        %970 = vmatprep.subr.mxu0 0.0
        %971 = vmatpush1.msra.mxu0 0.0
        %972 = vmatprep.subr.mxu0 0.0
        %973 = vmatpush1.msra.mxu0 0.0
        %974 = vmatprep.subr.mxu0 %v939
        %975 = vmatpush1.msra.mxu0 %v938
        %976 = vmatprep.subr.mxu0 %v937
        %977 = vmatpush1.msra.mxu0 %v936
        %978 = vmatprep.subr.mxu0 %v935
        %979 = vmatpush1.msra.mxu0 %v934
        %980 = vmatprep.subr.mxu0 %v933
        %981 = vmatpush1.msra.mxu0 %v932
        %982 = vmatprep.subr.mxu0 0.0
        %983 = vmatpush2.msra.mxu0 0.0
        %984 = vmatprep.subr.mxu0 0.0
        %985 = vmatpush2.msra.mxu0 0.0
        %986 = vmatprep.subr.mxu0 0.0
        %987 = vmatpush2.msra.mxu0 0.0
        %988 = vmatprep.subr.mxu0 0.0
        %989 = vmatpush2.msra.mxu0 0.0
        %990 = vmatprep.subr.mxu0 0.0
        %991 = vmatpush2.msra.mxu0 0.0
        %992 = vmatprep.subr.mxu0 0.0
        %993 = vmatpush2.msra.mxu0 0.0
        %994 = vmatprep.subr.mxu0 0.0
        %995 = vmatpush2.msra.mxu0 0.0
        %996 = vmatprep.subr.mxu0 0.0
        %997 = vmatpush2.msra.mxu0 0.0
        %998 = vmatprep.subr.mxu0 0.0
        %999 = vmatpush2.msra.mxu0 0.0
        %1000 = vmatprep.subr.mxu0 0.0
        %1001 = vmatpush2.msra.mxu0 0.0
        %1002 = vmatprep.subr.mxu0 0.0
        %1003 = vmatpush2.msra.mxu0 0.0
        %1004 = vmatprep.subr.mxu0 0.0
        %1005 = vmatpush2.msra.mxu0 0.0
        %1006 = vmatprep.subr.mxu0 0.0
        %1007 = vmatpush2.msra.mxu0 0.0
        %1008 = vmatprep.subr.mxu0 0.0
        %1009 = vmatpush2.msra.mxu0 0.0
        %1010 = vmatprep.subr.mxu0 0.0
        %1011 = vmatpush2.msra.mxu0 0.0
        %1012 = vmatprep.subr.mxu0 0.0
        %1013 = vmatpush2.msra.mxu0 0.0
        %1014 = vmatprep.mubr.f32.mxu0 0.0
        %1015 = vmatmul.mubr.f32.gmra.mxu0 %v948
        %v1016 = vpop.f32.mrf.mxu0
        %v1017 = vadd.f32 %v945, %v1016
        %v1018 = vpop.f32.mrf.mxu0
        %v1019 = vadd.f32 %v945, %v1018
        %1020 = vdwg.mxu0
        %1021 = vst [vmem:[%s350] sm:$0xff] %v1017
        %1022 = vst [vmem:[%s350 + $0x8] sm:$0xff] %v1019
        %s1023 = sand.u32 %s241, 1
        %s1024 = scalar_lea.sflag [#allocation3], %s1023
        %s1025 = sand.u32 %s241, 1
        %s1026 = smul.addr %s1025, 16
        %s1027 = scalar_lea.vmem [#allocation2], %s1026
        // Predicated region
        $region57: #{tpu_custom_call.1} parent=55 // pred_check
          %p1028 = pneg %p251
        $region58: #{tpu_custom_call.1} parent=55 // pred_check_branch
          %1030 = sbr.rel (%p1028) target = $region60
        $region59: #{tpu_custom_call.1} parent=55 // pred_region
          %s1031 = smul.u32 2, %s28
          %s1033 = ssub.s32 256, 256
          %1034 = vsyncadd %s1024, %s1033
          %s1035 = smul.addr %s27, 2
          %s1036 = sadd.s32 %s1031, %s1035
          %s1037 = smul.addr %s1036, 128
          %s1038 = scalar_lea.hbm %s9, %s1037
          %s1040 = sshll.u32 %s1027, 4
          %s1041 = int_to_ptr.vmem [resolvable:$true] %s1040
          %1043 = dma.vmem_to_hbm [thread:$0]  %s1041, 256, %s1038, %s1024
        $region60: #{tpu_custom_call.1} parent=55 // pred_fallthru
          _
      $region56: #{tpu_custom_call.1} parent=5 // pred_fallthru
        _
      %p1044 = scmp.le.s32.totalorder 2, %s18
      // Predicated region
      $region61: #{tpu_custom_call.1} parent=5 // pred_check
        %p1045 = pneg %p1044
      $region62: #{tpu_custom_call.1} parent=5 // pred_check_branch
        %1047 = sbr.rel (%p1045) target = $region64
      $region63: #{tpu_custom_call.1} parent=5 // pred_region
        %s1048 = ssub.s32 %s18, 2
        // Predicated region
        $region65: #{tpu_custom_call.1} parent=63 // pred_check
          %p1049 = pneg %p257
        $region66: #{tpu_custom_call.1} parent=63 // pred_check_branch
          %1051 = sbr.rel (%p1049) target = $region68
        $region67: #{tpu_custom_call.1} parent=63 // pred_region
          %s1052 = sand.u32 %s242, 1
          %s1053 = scalar_lea.sflag [#allocation3], %s1052
          %s1054 = sand.u32 %s242, 1
          %s1055 = smul.addr %s1054, 16
          %s1056 = scalar_lea.vmem [#allocation2], %s1055
          %1057 = dma.done %s1053, 256
        $region68: #{tpu_custom_call.1} parent=63 // pred_fallthru
          _
      $region64: #{tpu_custom_call.1} parent=5 // pred_fallthru
        _
    $region6: #{tpu_custom_call.1} parent=1 // loop_footer
      %s22 = sadd.s32 1, %s18
    $region7: #{tpu_custom_call.1} parent=1 // loop_footer_branch
      %17 = sbr.rel target = $region3
    $region8: #{tpu_custom_call.1} parent=1 // loop_exit
      _
    %1058 = vsyncpa [#allocation3], 1
    %s1059 = scalar_lea.sflag [#allocation3], 1
    %1060 = vsyncpa %s1059, 1

</llo_original>
